<compile_context>
chip_gen: v5e
topology: v5e:2x2
jax: 0.10.0
libtpu: 0.0.40
codegen_flags: <defaults>
</compile_context>

<pallas_src>
import jax
import jax.numpy as jnp
from jax import lax
from jax.experimental import pallas as pl
from jax.experimental.pallas import tpu as pltpu


def wide_conv_kernel(s1_ref, s2_ref, m1_ref, m2_ref, w_ref, cw_ref, cb_ref,
                     o1_ref, o2_ref, s1w_ref, s2w_ref):
    TB, L, D = s1_ref.shape
    Dp = w_ref.shape[1]                    # lane-dense width (multiple of 128)
    f32 = jnp.float32

    s1 = s1_ref[...]                       # (TB, L, D) raw sentences (conv ch 0)
    s2 = s2_ref[...]
    m1 = m1_ref[...]                       # (TB, L, 1) 1.0 where original mask == 0
    m2 = m2_ref[...]
    W = w_ref[...]                         # (L, Dp), zero beyond column D-1

    # ---- match score A[b,i,j] = 1 / (1 + ||ms1_i - ms2_j||_2)  (MXU path) ----
    ms1 = s1 * m1
    ms2 = s2 * m2
    gram = jnp.einsum('bid,bjd->bij', ms1, ms2,
                      preferred_element_type=f32)              # (TB, L, L)
    n1 = jnp.sum(ms1 * ms1, axis=-1, keepdims=True)            # (TB, L, 1)
    n2 = jnp.sum(ms2 * ms2, axis=-1, keepdims=True)
    dist2 = jnp.maximum(n1 + jnp.swapaxes(n2, 1, 2) - 2.0 * gram, 0.0)
    A = 1.0 / (1.0 + jnp.sqrt(dist2))                          # (TB, L, L)

    # ---- fused attention feature maps: one MXU pass for [A; A^T] @ W ----
    A2 = A.reshape(TB * L, L)
    At2 = jnp.swapaxes(A, 1, 2).reshape(TB * L, L)
    attn = jnp.dot(jnp.concatenate([A2, At2], axis=0), W,
                   preferred_element_type=f32)                 # (2*TB*L, Dp)
    attn1 = attn[:TB * L].reshape(TB, L, Dp)
    attn2 = attn[TB * L:].reshape(TB, L, Dp)

    # ---- zero-extend channel 0 to the lane-dense width Dp (exact, in VMEM) ----
    if D == Dp:
        s1w, s2w = s1, s2
    else:
        s1w_ref[...] = jnp.zeros((TB, L, Dp), f32)
        s2w_ref[...] = jnp.zeros((TB, L, Dp), f32)
        s1w_ref[:, :, :D] = s1             # masked store, lane offset 0
        s2w_ref[:, :, :D] = s2
        s1w = s1w_ref[...]
        s2w = s2w_ref[...]

    # ---- 3x3 'SAME' conv over each (L, Dp) plane (2 in-ch -> 1 out-ch) + tanh ----
    # Columns >= D are zero in BOTH channels, so masking the dx shifts at the
    # Dp boundary reproduces the conv's zero padding exactly for columns < D;
    # columns >= D are discarded by the final [:, :, :D] slice.
    col = lax.broadcasted_iota(jnp.int32, (1, Dp), 1)
    row = lax.broadcasted_iota(jnp.int32, (L, 1), 0)
    not_col0 = (col > 0).astype(f32)
    not_colN = (col < Dp - 1).astype(f32)
    not_row0 = (row > 0).astype(f32)
    not_rowN = (row < L - 1).astype(f32)

    cw = [cw_ref[i] for i in range(18)]    # conv weight [out=1, in=2, 3, 3] flat
    bias = cb_ref[0]

    def shift_dx(x, dx):                   # result[..., j] = x[..., j + dx], zero fill
        if dx == 0:
            return x
        if dx > 0:                         # == jnp.roll(x, -1, axis=-1)
            return pltpu.roll(x, Dp - 1, 2) * not_colN
        return pltpu.roll(x, 1, 2) * not_col0

    def shift_dy(x, dy):                   # result[:, i, :] = x[:, i + dy, :], zero fill
        if dy == 0:
            return x
        if dy > 0:
            return pltpu.roll(x, L - 1, 1) * not_rowN
        return pltpu.roll(x, 1, 1) * not_row0

    def conv3x3_tanh(ch0, ch1):
        # hoist the lane (dx) shifts: 3 per channel instead of one per tap
        c0 = [shift_dx(ch0, dx) for dx in (-1, 0, 1)]
        c1 = [shift_dx(ch1, dx) for dx in (-1, 0, 1)]
        acc = None
        for dy in (-1, 0, 1):
            t = None
            for dx in (-1, 0, 1):
                k = (dy + 1) * 3 + (dx + 1)
                term = cw[k] * c0[dx + 1] + cw[9 + k] * c1[dx + 1]
                t = term if t is None else t + term
            t = shift_dy(t, dy)
            acc = t if acc is None else acc + t
        return jnp.tanh(acc + bias)

    o1_ref[...] = conv3x3_tanh(s1w, attn1)[:, :, :D]
    o2_ref[...] = conv3x3_tanh(s2w, attn2)[:, :, :D]


def _pick_block_b(B, block_b):
    """Batch block size: big enough to fill the MXU (TB*L >= 256 when B allows),
    but with >= 2 grid steps so both v7x TensorCores get work, preferring an
    exact divisor of B so no padded-batch tail is computed."""
    tb = max(1, min(block_b, pl.cdiv(B, 2)))
    for d in range(tb, max(1, tb // 2) - 1, -1):   # don't shrink more than 2x
        if B % d == 0:
            return d
    return tb


def wide_conv(sent1, sent2, mask1, mask2, W, conv_w, conv_b, *, block_b=64):
    B, L, D = sent1.shape
    Dp = 128 * pl.cdiv(D, 128)             # in-kernel lane-dense width
    TB = _pick_block_b(B, block_b)
    nb = pl.cdiv(B, TB)
    Bp = nb * TB

    s1 = sent1.astype(jnp.float32)         # stays D-wide in HBM (no Dp pad pass)
    s2 = sent2.astype(jnp.float32)
    m1 = (mask1 == 0).astype(jnp.float32)[:, :, None]
    m2 = (mask2 == 0).astype(jnp.float32)[:, :, None]
    if Bp != B:                            # rare: pad only the batch tail
        pad = ((0, Bp - B), (0, 0), (0, 0))
        s1, s2, m1, m2 = [jnp.pad(a, pad) for a in (s1, s2, m1, m2)]
    Wp = jnp.pad(W.astype(jnp.float32), ((0, 0), (0, Dp - D)))   # tiny parameter
    cw = conv_w.reshape(-1).astype(jnp.float32)   # (18,)  [out=1, in=2, 3, 3]
    cb = conv_b.reshape(-1).astype(jnp.float32)   # (1,)

    grid_spec = pltpu.PrefetchScalarGridSpec(
        num_scalar_prefetch=0,
        grid=(nb,),
        in_specs=[
            pl.BlockSpec((TB, L, D), lambda b: (b, 0, 0)),      # sent1
            pl.BlockSpec((TB, L, D), lambda b: (b, 0, 0)),      # sent2
            pl.BlockSpec((TB, L, 1), lambda b: (b, 0, 0)),      # mask1 multiplier
            pl.BlockSpec((TB, L, 1), lambda b: (b, 0, 0)),      # mask2 multiplier
            pl.BlockSpec((L, Dp), lambda b: (0, 0)),            # W (shared, resident)
            pl.BlockSpec(memory_space=pltpu.MemorySpace.SMEM),  # conv weights (18,)
            pl.BlockSpec(memory_space=pltpu.MemorySpace.SMEM),  # conv bias (1,)
        ],
        out_specs=[
            pl.BlockSpec((TB, L, D), lambda b: (b, 0, 0)),
            pl.BlockSpec((TB, L, D), lambda b: (b, 0, 0)),
        ],
        scratch_shapes=[
            pltpu.VMEM((TB, L, Dp), jnp.float32),               # wide channel-0 (s1)
            pltpu.VMEM((TB, L, Dp), jnp.float32),               # wide channel-0 (s2)
        ],
    )
    o1, o2 = pl.pallas_call(
        wide_conv_kernel,
        out_shape=(jax.ShapeDtypeStruct((Bp, L, D), jnp.float32),
                   jax.ShapeDtypeStruct((Bp, L, D), jnp.float32)),
        grid_spec=grid_spec,
        compiler_params=pltpu.CompilerParams(
            dimension_semantics=("parallel",),
            vmem_limit_bytes=48 * 1024 * 1024),   # v7x-safe (64 MiB physical)
    )(s1, s2, m1, m2, Wp, cw, cb)
    if Bp != B:
        o1, o2 = o1[:B], o2[:B]
    return o1, o2


def reference(sent1, sent2, mask1, mask2, W, conv_w, conv_b):
    """Pure-JAX mirror of the PyTorch forward (for correctness checking)."""
    m1 = (mask1 == 0).astype(jnp.float32)[:, :, None]
    m2 = (mask2 == 0).astype(jnp.float32)[:, :, None]
    s1 = sent1 * m1
    s2 = sent2 * m2
    diff = s1[:, :, None, :] - s2[:, None, :, :]
    A = 1.0 / (1.0 + jnp.sqrt(jnp.sum(diff * diff, axis=-1)))
    attn1 = A @ W
    attn2 = jnp.swapaxes(A, 1, 2) @ W
    x1 = jnp.stack([sent1, attn1], axis=1)   # (B, 2, L, D)  NCHW
    x2 = jnp.stack([sent2, attn2], axis=1)

    def conv(x):
        y = lax.conv_general_dilated(x, conv_w, window_strides=(1, 1),
                                     padding=((1, 1), (1, 1)),
                                     dimension_numbers=("NCHW", "OIHW", "NCHW"))
        return jnp.tanh(y[:, 0] + conv_b[0])

    return conv(x1), conv(x2)


if __name__ == "__main__":
    B, L, D = 2, 8, 32   # batch, seq_len, embeds_size
    key = jax.random.PRNGKey(0)
    k1, k2, k3, k4, kw, kcw, kcb = jax.random.split(key, 7)

    sent1 = jax.random.normal(k1, (B, L, D), jnp.float32)
    sent2 = jax.random.normal(k2, (B, L, D), jnp.float32)
    mask1 = (jax.random.uniform(k3, (B, L)) < 0.25).astype(jnp.int32)  # nonzero => masked
    mask2 = (jax.random.uniform(k4, (B, L)) < 0.25).astype(jnp.int32)

    # deterministic parameter init (mirrors shapes from __init__)
    xavier_std = (2.0 / (L + D)) ** 0.5
    W = jax.random.normal(kw, (L, D), jnp.float32) * xavier_std          # (seq_len, embeds_size)
    fan_in = 2 * 3 * 3
    bound = 1.0 / (fan_in ** 0.5)
    conv_w = jax.random.uniform(kcw, (1, 2, 3, 3), jnp.float32, -bound, bound)
    conv_b = jax.random.uniform(kcb, (1,), jnp.float32, -bound, bound)

    o1, o2 = wide_conv(sent1, sent2, mask1, mask2, W, conv_w, conv_b)
    jax.block_until_ready((o1, o2))

    r1, r2 = reference(sent1, sent2, mask1, mask2, W, conv_w, conv_b)
    assert o1.shape == (B, L, D) and o2.shape == (B, L, D)
    # tolerance allows for MXU matmul pass differences vs the f32 VPU reference
    assert jnp.allclose(o1, r1, atol=1e-3, rtol=1e-3), float(jnp.max(jnp.abs(o1 - r1)))
    assert jnp.allclose(o2, r2, atol=1e-3, rtol=1e-3), float(jnp.max(jnp.abs(o2 - r2)))
    print("KERNEL_OK")
</pallas_src>

<mosaic_0001>
module attributes {stable_mosaic.version = 11 : i64} {
  func.func @wide_conv_kernel(%arg0: i32, %arg1: memref<1x8x32xf32, #tpu.memory_space<vmem>>, %arg2: memref<1x8x32xf32, #tpu.memory_space<vmem>>, %arg3: memref<1x8x1xf32, #tpu.memory_space<vmem>>, %arg4: memref<1x8x1xf32, #tpu.memory_space<vmem>>, %arg5: memref<8x128xf32, #tpu.memory_space<vmem>>, %arg6: memref<18xf32, #tpu.memory_space<smem>>, %arg7: memref<1xf32, #tpu.memory_space<smem>>, %arg8: memref<1x8x32xf32, #tpu.memory_space<vmem>>, %arg9: memref<1x8x32xf32, #tpu.memory_space<vmem>>, %arg10: memref<1x8x128xf32, #tpu.memory_space<vmem>>, %arg11: memref<1x8x128xf32, #tpu.memory_space<vmem>>) attributes {dimension_semantics = [#tpu.dimension_semantics<parallel>], iteration_bounds = array<i64: 2>, scalar_prefetch = 0 : i64, scratch_operands = 2 : i64, tpu.core_type = #tpu.core_type<tc>, window_params = [{transform_indices = @transform_0, window_bounds = array<i64: 1, 8, 32>}, {transform_indices = @transform_1, window_bounds = array<i64: 1, 8, 32>}, {transform_indices = @transform_2, window_bounds = array<i64: 1, 8, 1>}, {transform_indices = @transform_3, window_bounds = array<i64: 1, 8, 1>}, {pipeline_mode = #tpu.pipeline_mode<synchronous>, transform_indices = @transform_4, window_bounds = array<i64: 8, 128>}, {transform_indices = @transform_5, window_bounds = array<i64: 18>}, {transform_indices = @transform_6, window_bounds = array<i64: 1>}, {transform_indices = @transform_7, window_bounds = array<i64: 1, 8, 32>}, {transform_indices = @transform_8, window_bounds = array<i64: 1, 8, 32>}]} {
    %c0 = arith.constant 0 : index
    %c0_0 = arith.constant 0 : index
    %c0_1 = arith.constant 0 : index
    %0 = vector.load %arg1[%c0, %c0_0, %c0_1] : memref<1x8x32xf32, #tpu.memory_space<vmem>>, vector<1x8x32xf32>
    %c0_2 = arith.constant 0 : index
    %c0_3 = arith.constant 0 : index
    %c0_4 = arith.constant 0 : index
    %1 = vector.load %arg2[%c0_2, %c0_3, %c0_4] : memref<1x8x32xf32, #tpu.memory_space<vmem>>, vector<1x8x32xf32>
    %c0_5 = arith.constant 0 : index
    %c0_6 = arith.constant 0 : index
    %c0_7 = arith.constant 0 : index
    %2 = vector.load %arg3[%c0_5, %c0_6, %c0_7] : memref<1x8x1xf32, #tpu.memory_space<vmem>>, vector<1x8x1xf32>
    %c0_8 = arith.constant 0 : index
    %c0_9 = arith.constant 0 : index
    %c0_10 = arith.constant 0 : index
    %3 = vector.load %arg4[%c0_8, %c0_9, %c0_10] : memref<1x8x1xf32, #tpu.memory_space<vmem>>, vector<1x8x1xf32>
    %c0_11 = arith.constant 0 : index
    %c0_12 = arith.constant 0 : index
    %4 = vector.load %arg5[%c0_11, %c0_12] : memref<8x128xf32, #tpu.memory_space<vmem>>, vector<8x128xf32>
    %5 = vector.broadcast %2 : vector<1x8x1xf32> to vector<1x8x32xf32>
    %6 = arith.mulf %0, %5 : vector<1x8x32xf32>
    %7 = vector.broadcast %3 : vector<1x8x1xf32> to vector<1x8x32xf32>
    %8 = arith.mulf %1, %7 : vector<1x8x32xf32>
    "tpu.trace_start"() <{level = 10 : i32, message = "bid,bjd->bij"}> : () -> ()
    %cst = arith.constant dense<0.000000e+00> : vector<1x8x8xf32>
    %9 = tpu.matmul %6, %8, %cst {dimension_numbers = #tpu.dot_dimension_numbers<[2], [2], [1], [1], [0, 0, 0, 1, 1, 1], [0], [0]>} : vector<1x8x32xf32>, vector<1x8x32xf32>, vector<1x8x8xf32> -> vector<1x8x8xf32>
    "tpu.trace_stop"() : () -> ()
    %10 = arith.mulf %6, %6 : vector<1x8x32xf32>
    %cst_13 = arith.constant dense<0.000000e+00> : vector<1x8xf32>
    %11 = vector.multi_reduction <add>, %10, %cst_13 [2] : vector<1x8x32xf32> to vector<1x8xf32>
    %12 = vector.shape_cast %11 : vector<1x8xf32> to vector<1x8x1xf32>
    %13 = arith.mulf %8, %8 : vector<1x8x32xf32>
    %cst_14 = arith.constant dense<0.000000e+00> : vector<1x8xf32>
    %14 = vector.multi_reduction <add>, %13, %cst_14 [2] : vector<1x8x32xf32> to vector<1x8xf32>
    %15 = vector.shape_cast %14 : vector<1x8xf32> to vector<1x8x1xf32>
    %16 = tpu.transpose %15, [0, 2, 1] : vector<1x8x1xf32> -> vector<1x1x8xf32>
    %17 = vector.broadcast %12 : vector<1x8x1xf32> to vector<1x8x8xf32>
    %18 = vector.broadcast %16 : vector<1x1x8xf32> to vector<1x8x8xf32>
    %19 = arith.addf %17, %18 : vector<1x8x8xf32>
    %cst_15 = arith.constant 2.000000e+00 : f32
    %20 = vector.broadcast %cst_15 : f32 to vector<1x8x8xf32>
    %21 = arith.mulf %20, %9 : vector<1x8x8xf32>
    %22 = arith.subf %19, %21 : vector<1x8x8xf32>
    %cst_16 = arith.constant 0.000000e+00 : f32
    %23 = vector.broadcast %cst_16 : f32 to vector<1x8x8xf32>
    %24 = arith.maximumf %22, %23 : vector<1x8x8xf32>
    %25 = math.sqrt %24 : vector<1x8x8xf32>
    %cst_17 = arith.constant 1.000000e+00 : f32
    %26 = vector.broadcast %cst_17 : f32 to vector<1x8x8xf32>
    %27 = arith.addf %26, %25 : vector<1x8x8xf32>
    %cst_18 = arith.constant 1.000000e+00 : f32
    %28 = vector.broadcast %cst_18 : f32 to vector<1x8x8xf32>
    %29 = arith.divf %28, %27 : vector<1x8x8xf32>
    %30 = vector.shape_cast %29 : vector<1x8x8xf32> to vector<8x8xf32>
    %31 = tpu.transpose %29, [0, 2, 1] : vector<1x8x8xf32> -> vector<1x8x8xf32>
    %32 = vector.shape_cast %31 : vector<1x8x8xf32> to vector<8x8xf32>
    %33 = tpu.concatenate %30, %32 in 0 : vector<8x8xf32>, vector<8x8xf32> -> vector<16x8xf32>
    %cst_19 = arith.constant dense<0.000000e+00> : vector<16x128xf32>
    %34 = tpu.matmul %33, %4, %cst_19 {dimension_numbers = #tpu.dot_dimension_numbers<[1], [0], [0], [1], [0, 0, 1, 1], [], []>} : vector<16x8xf32>, vector<8x128xf32>, vector<16x128xf32> -> vector<16x128xf32>
    %35 = vector.extract_strided_slice %34 {offsets = [0, 0], sizes = [8, 128], strides = [1, 1]} : vector<16x128xf32> to vector<8x128xf32>
    %36 = vector.shape_cast %35 : vector<8x128xf32> to vector<1x8x128xf32>
    %37 = vector.extract_strided_slice %34 {offsets = [8, 0], sizes = [8, 128], strides = [1, 1]} : vector<16x128xf32> to vector<8x128xf32>
    %38 = vector.shape_cast %37 : vector<8x128xf32> to vector<1x8x128xf32>
    %cst_20 = arith.constant 0.000000e+00 : f32
    %39 = vector.broadcast %cst_20 : f32 to vector<1x8x128xf32>
    %c0_21 = arith.constant 0 : index
    %c0_22 = arith.constant 0 : index
    %c0_23 = arith.constant 0 : index
    %40 = vector.load %arg10[%c0_21, %c0_22, %c0_23] : memref<1x8x128xf32, #tpu.memory_space<vmem>>, vector<1x8x128xf32>
    tpu.vector_store %arg10[%c0_21, %c0_22, %c0_23], %39 {strides = array<i32>} : memref<1x8x128xf32, #tpu.memory_space<vmem>>, vector<1x8x128xf32>,
    %cst_24 = arith.constant 0.000000e+00 : f32
    %41 = vector.broadcast %cst_24 : f32 to vector<1x8x128xf32>
    %c0_25 = arith.constant 0 : index
    %c0_26 = arith.constant 0 : index
    %c0_27 = arith.constant 0 : index
    %42 = vector.load %arg11[%c0_25, %c0_26, %c0_27] : memref<1x8x128xf32, #tpu.memory_space<vmem>>, vector<1x8x128xf32>
    tpu.vector_store %arg11[%c0_25, %c0_26, %c0_27], %41 {strides = array<i32>} : memref<1x8x128xf32, #tpu.memory_space<vmem>>, vector<1x8x128xf32>,
    %c0_28 = arith.constant 0 : index
    %c0_29 = arith.constant 0 : index
    %c0_30 = arith.constant 0 : index
    %43 = vector.load %arg10[%c0_28, %c0_29, %c0_30] : memref<1x8x128xf32, #tpu.memory_space<vmem>>, vector<1x8x32xf32>
    tpu.vector_store %arg10[%c0_28, %c0_29, %c0_30], %0 {strides = array<i32>} : memref<1x8x128xf32, #tpu.memory_space<vmem>>, vector<1x8x32xf32>,
    %c0_31 = arith.constant 0 : index
    %c0_32 = arith.constant 0 : index
    %c0_33 = arith.constant 0 : index
    %44 = vector.load %arg11[%c0_31, %c0_32, %c0_33] : memref<1x8x128xf32, #tpu.memory_space<vmem>>, vector<1x8x32xf32>
    tpu.vector_store %arg11[%c0_31, %c0_32, %c0_33], %1 {strides = array<i32>} : memref<1x8x128xf32, #tpu.memory_space<vmem>>, vector<1x8x32xf32>,
    %c0_34 = arith.constant 0 : index
    %c0_35 = arith.constant 0 : index
    %c0_36 = arith.constant 0 : index
    %45 = vector.load %arg10[%c0_34, %c0_35, %c0_36] : memref<1x8x128xf32, #tpu.memory_space<vmem>>, vector<1x8x128xf32>
    %c0_37 = arith.constant 0 : index
    %c0_38 = arith.constant 0 : index
    %c0_39 = arith.constant 0 : index
    %46 = vector.load %arg11[%c0_37, %c0_38, %c0_39] : memref<1x8x128xf32, #tpu.memory_space<vmem>>, vector<1x8x128xf32>
    %47 = tpu.iota {dimensions = array<i32: 1>} : vector<1x128xi32>
    %48 = tpu.iota {dimensions = array<i32: 0>} : vector<8x1xi32>
    %c0_i32 = arith.constant 0 : i32
    %49 = vector.broadcast %c0_i32 : i32 to vector<1x128xi32>
    %50 = arith.cmpi sgt, %47, %49 : vector<1x128xi32>
    %51 = arith.extui %50 : vector<1x128xi1> to vector<1x128xi32>
    %52 = arith.sitofp %51 : vector<1x128xi32> to vector<1x128xf32>
    %c127_i32 = arith.constant 127 : i32
    %53 = vector.broadcast %c127_i32 : i32 to vector<1x128xi32>
    %54 = arith.cmpi slt, %47, %53 : vector<1x128xi32>
    %55 = arith.extui %54 : vector<1x128xi1> to vector<1x128xi32>
    %56 = arith.sitofp %55 : vector<1x128xi32> to vector<1x128xf32>
    %c0_i32_40 = arith.constant 0 : i32
    %57 = vector.broadcast %c0_i32_40 : i32 to vector<8x1xi32>
    %58 = arith.cmpi sgt, %48, %57 : vector<8x1xi32>
    %59 = arith.extui %58 : vector<8x1xi1> to vector<8x1xi32>
    %60 = arith.sitofp %59 : vector<8x1xi32> to vector<8x1xf32>
    %c7_i32 = arith.constant 7 : i32
    %61 = vector.broadcast %c7_i32 : i32 to vector<8x1xi32>
    %62 = arith.cmpi slt, %48, %61 : vector<8x1xi32>
    %63 = arith.extui %62 : vector<8x1xi1> to vector<8x1xi32>
    %64 = arith.sitofp %63 : vector<8x1xi32> to vector<8x1xf32>
    %c0_41 = arith.constant 0 : index
    %65 = memref.load %arg6[%c0_41] : memref<18xf32, #tpu.memory_space<smem>>
    %c1 = arith.constant 1 : index
    %66 = memref.load %arg6[%c1] : memref<18xf32, #tpu.memory_space<smem>>
    %c2 = arith.constant 2 : index
    %67 = memref.load %arg6[%c2] : memref<18xf32, #tpu.memory_space<smem>>
    %c3 = arith.constant 3 : index
    %68 = memref.load %arg6[%c3] : memref<18xf32, #tpu.memory_space<smem>>
    %c4 = arith.constant 4 : index
    %69 = memref.load %arg6[%c4] : memref<18xf32, #tpu.memory_space<smem>>
    %c5 = arith.constant 5 : index
    %70 = memref.load %arg6[%c5] : memref<18xf32, #tpu.memory_space<smem>>
    %c6 = arith.constant 6 : index
    %71 = memref.load %arg6[%c6] : memref<18xf32, #tpu.memory_space<smem>>
    %c7 = arith.constant 7 : index
    %72 = memref.load %arg6[%c7] : memref<18xf32, #tpu.memory_space<smem>>
    %c8 = arith.constant 8 : index
    %73 = memref.load %arg6[%c8] : memref<18xf32, #tpu.memory_space<smem>>
    %c9 = arith.constant 9 : index
    %74 = memref.load %arg6[%c9] : memref<18xf32, #tpu.memory_space<smem>>
    %c10 = arith.constant 10 : index
    %75 = memref.load %arg6[%c10] : memref<18xf32, #tpu.memory_space<smem>>
    %c11 = arith.constant 11 : index
    %76 = memref.load %arg6[%c11] : memref<18xf32, #tpu.memory_space<smem>>
    %c12 = arith.constant 12 : index
    %77 = memref.load %arg6[%c12] : memref<18xf32, #tpu.memory_space<smem>>
    %c13 = arith.constant 13 : index
    %78 = memref.load %arg6[%c13] : memref<18xf32, #tpu.memory_space<smem>>
    %c14 = arith.constant 14 : index
    %79 = memref.load %arg6[%c14] : memref<18xf32, #tpu.memory_space<smem>>
    %c15 = arith.constant 15 : index
    %80 = memref.load %arg6[%c15] : memref<18xf32, #tpu.memory_space<smem>>
    %c16 = arith.constant 16 : index
    %81 = memref.load %arg6[%c16] : memref<18xf32, #tpu.memory_space<smem>>
    %c17 = arith.constant 17 : index
    %82 = memref.load %arg6[%c17] : memref<18xf32, #tpu.memory_space<smem>>
    %c0_42 = arith.constant 0 : index
    %83 = memref.load %arg7[%c0_42] : memref<1xf32, #tpu.memory_space<smem>>
    %c1_i32 = arith.constant 1 : i32
    %84 = tpu.dynamic_rotate %45 by %c1_i32 dim 2 : vector<1x8x128xf32>, i32 -> vector<1x8x128xf32>
    %85 = vector.shape_cast %52 : vector<1x128xf32> to vector<1x1x128xf32>
    %86 = vector.broadcast %85 : vector<1x1x128xf32> to vector<1x8x128xf32>
    %87 = arith.mulf %84, %86 : vector<1x8x128xf32>
    %c127_i32_43 = arith.constant 127 : i32
    %88 = tpu.dynamic_rotate %45 by %c127_i32_43 dim 2 : vector<1x8x128xf32>, i32 -> vector<1x8x128xf32>
    %89 = vector.shape_cast %56 : vector<1x128xf32> to vector<1x1x128xf32>
    %90 = vector.broadcast %89 : vector<1x1x128xf32> to vector<1x8x128xf32>
    %91 = arith.mulf %88, %90 : vector<1x8x128xf32>
    %c1_i32_44 = arith.constant 1 : i32
    %92 = tpu.dynamic_rotate %36 by %c1_i32_44 dim 2 : vector<1x8x128xf32>, i32 -> vector<1x8x128xf32>
    %93 = vector.shape_cast %52 : vector<1x128xf32> to vector<1x1x128xf32>
    %94 = vector.broadcast %93 : vector<1x1x128xf32> to vector<1x8x128xf32>
    %95 = arith.mulf %92, %94 : vector<1x8x128xf32>
    %c127_i32_45 = arith.constant 127 : i32
    %96 = tpu.dynamic_rotate %36 by %c127_i32_45 dim 2 : vector<1x8x128xf32>, i32 -> vector<1x8x128xf32>
    %97 = vector.shape_cast %56 : vector<1x128xf32> to vector<1x1x128xf32>
    %98 = vector.broadcast %97 : vector<1x1x128xf32> to vector<1x8x128xf32>
    %99 = arith.mulf %96, %98 : vector<1x8x128xf32>
    %100 = vector.broadcast %65 : f32 to vector<1x8x128xf32>
    %101 = arith.mulf %100, %87 : vector<1x8x128xf32>
    %102 = vector.broadcast %74 : f32 to vector<1x8x128xf32>
    %103 = arith.mulf %102, %95 : vector<1x8x128xf32>
    %104 = arith.addf %101, %103 : vector<1x8x128xf32>
    %105 = vector.broadcast %66 : f32 to vector<1x8x128xf32>
    %106 = arith.mulf %105, %45 : vector<1x8x128xf32>
    %107 = vector.broadcast %75 : f32 to vector<1x8x128xf32>
    %108 = arith.mulf %107, %36 : vector<1x8x128xf32>
    %109 = arith.addf %106, %108 : vector<1x8x128xf32>
    %110 = arith.addf %104, %109 : vector<1x8x128xf32>
    %111 = vector.broadcast %67 : f32 to vector<1x8x128xf32>
    %112 = arith.mulf %111, %91 : vector<1x8x128xf32>
    %113 = vector.broadcast %76 : f32 to vector<1x8x128xf32>
    %114 = arith.mulf %113, %99 : vector<1x8x128xf32>
    %115 = arith.addf %112, %114 : vector<1x8x128xf32>
    %116 = arith.addf %110, %115 : vector<1x8x128xf32>
    %c1_i32_46 = arith.constant 1 : i32
    %117 = tpu.dynamic_rotate %116 by %c1_i32_46 dim 1 : vector<1x8x128xf32>, i32 -> vector<1x8x128xf32>
    %118 = vector.shape_cast %60 : vector<8x1xf32> to vector<1x8x1xf32>
    %119 = vector.broadcast %118 : vector<1x8x1xf32> to vector<1x8x128xf32>
    %120 = arith.mulf %117, %119 : vector<1x8x128xf32>
    %121 = vector.broadcast %68 : f32 to vector<1x8x128xf32>
    %122 = arith.mulf %121, %87 : vector<1x8x128xf32>
    %123 = vector.broadcast %77 : f32 to vector<1x8x128xf32>
    %124 = arith.mulf %123, %95 : vector<1x8x128xf32>
    %125 = arith.addf %122, %124 : vector<1x8x128xf32>
    %126 = vector.broadcast %69 : f32 to vector<1x8x128xf32>
    %127 = arith.mulf %126, %45 : vector<1x8x128xf32>
    %128 = vector.broadcast %78 : f32 to vector<1x8x128xf32>
    %129 = arith.mulf %128, %36 : vector<1x8x128xf32>
    %130 = arith.addf %127, %129 : vector<1x8x128xf32>
    %131 = arith.addf %125, %130 : vector<1x8x128xf32>
    %132 = vector.broadcast %70 : f32 to vector<1x8x128xf32>
    %133 = arith.mulf %132, %91 : vector<1x8x128xf32>
    %134 = vector.broadcast %79 : f32 to vector<1x8x128xf32>
    %135 = arith.mulf %134, %99 : vector<1x8x128xf32>
    %136 = arith.addf %133, %135 : vector<1x8x128xf32>
    %137 = arith.addf %131, %136 : vector<1x8x128xf32>
    %138 = arith.addf %120, %137 : vector<1x8x128xf32>
    %139 = vector.broadcast %71 : f32 to vector<1x8x128xf32>
    %140 = arith.mulf %139, %87 : vector<1x8x128xf32>
    %141 = vector.broadcast %80 : f32 to vector<1x8x128xf32>
    %142 = arith.mulf %141, %95 : vector<1x8x128xf32>
    %143 = arith.addf %140, %142 : vector<1x8x128xf32>
    %144 = vector.broadcast %72 : f32 to vector<1x8x128xf32>
    %145 = arith.mulf %144, %45 : vector<1x8x128xf32>
    %146 = vector.broadcast %81 : f32 to vector<1x8x128xf32>
    %147 = arith.mulf %146, %36 : vector<1x8x128xf32>
    %148 = arith.addf %145, %147 : vector<1x8x128xf32>
    %149 = arith.addf %143, %148 : vector<1x8x128xf32>
    %150 = vector.broadcast %73 : f32 to vector<1x8x128xf32>
    %151 = arith.mulf %150, %91 : vector<1x8x128xf32>
    %152 = vector.broadcast %82 : f32 to vector<1x8x128xf32>
    %153 = arith.mulf %152, %99 : vector<1x8x128xf32>
    %154 = arith.addf %151, %153 : vector<1x8x128xf32>
    %155 = arith.addf %149, %154 : vector<1x8x128xf32>
    %c7_i32_47 = arith.constant 7 : i32
    %156 = tpu.dynamic_rotate %155 by %c7_i32_47 dim 1 : vector<1x8x128xf32>, i32 -> vector<1x8x128xf32>
    %157 = vector.shape_cast %64 : vector<8x1xf32> to vector<1x8x1xf32>
    %158 = vector.broadcast %157 : vector<1x8x1xf32> to vector<1x8x128xf32>
    %159 = arith.mulf %156, %158 : vector<1x8x128xf32>
    %160 = arith.addf %138, %159 : vector<1x8x128xf32>
    %161 = vector.broadcast %83 : f32 to vector<1x8x128xf32>
    %162 = arith.addf %160, %161 : vector<1x8x128xf32>
    %163 = math.tanh %162 : vector<1x8x128xf32>
    %164 = vector.extract_strided_slice %163 {offsets = [0, 0, 0], sizes = [1, 8, 32], strides = [1, 1, 1]} : vector<1x8x128xf32> to vector<1x8x32xf32>
    %c0_48 = arith.constant 0 : index
    %c0_49 = arith.constant 0 : index
    %c0_50 = arith.constant 0 : index
    %165 = vector.load %arg8[%c0_48, %c0_49, %c0_50] : memref<1x8x32xf32, #tpu.memory_space<vmem>>, vector<1x8x32xf32>
    tpu.vector_store %arg8[%c0_48, %c0_49, %c0_50], %164 {strides = array<i32>} : memref<1x8x32xf32, #tpu.memory_space<vmem>>, vector<1x8x32xf32>,
    %c1_i32_51 = arith.constant 1 : i32
    %166 = tpu.dynamic_rotate %46 by %c1_i32_51 dim 2 : vector<1x8x128xf32>, i32 -> vector<1x8x128xf32>
    %167 = vector.shape_cast %52 : vector<1x128xf32> to vector<1x1x128xf32>
    %168 = vector.broadcast %167 : vector<1x1x128xf32> to vector<1x8x128xf32>
    %169 = arith.mulf %166, %168 : vector<1x8x128xf32>
    %c127_i32_52 = arith.constant 127 : i32
    %170 = tpu.dynamic_rotate %46 by %c127_i32_52 dim 2 : vector<1x8x128xf32>, i32 -> vector<1x8x128xf32>
    %171 = vector.shape_cast %56 : vector<1x128xf32> to vector<1x1x128xf32>
    %172 = vector.broadcast %171 : vector<1x1x128xf32> to vector<1x8x128xf32>
    %173 = arith.mulf %170, %172 : vector<1x8x128xf32>
    %c1_i32_53 = arith.constant 1 : i32
    %174 = tpu.dynamic_rotate %38 by %c1_i32_53 dim 2 : vector<1x8x128xf32>, i32 -> vector<1x8x128xf32>
    %175 = vector.shape_cast %52 : vector<1x128xf32> to vector<1x1x128xf32>
    %176 = vector.broadcast %175 : vector<1x1x128xf32> to vector<1x8x128xf32>
    %177 = arith.mulf %174, %176 : vector<1x8x128xf32>
    %c127_i32_54 = arith.constant 127 : i32
    %178 = tpu.dynamic_rotate %38 by %c127_i32_54 dim 2 : vector<1x8x128xf32>, i32 -> vector<1x8x128xf32>
    %179 = vector.shape_cast %56 : vector<1x128xf32> to vector<1x1x128xf32>
    %180 = vector.broadcast %179 : vector<1x1x128xf32> to vector<1x8x128xf32>
    %181 = arith.mulf %178, %180 : vector<1x8x128xf32>
    %182 = vector.broadcast %65 : f32 to vector<1x8x128xf32>
    %183 = arith.mulf %182, %169 : vector<1x8x128xf32>
    %184 = vector.broadcast %74 : f32 to vector<1x8x128xf32>
    %185 = arith.mulf %184, %177 : vector<1x8x128xf32>
    %186 = arith.addf %183, %185 : vector<1x8x128xf32>
    %187 = vector.broadcast %66 : f32 to vector<1x8x128xf32>
    %188 = arith.mulf %187, %46 : vector<1x8x128xf32>
    %189 = vector.broadcast %75 : f32 to vector<1x8x128xf32>
    %190 = arith.mulf %189, %38 : vector<1x8x128xf32>
    %191 = arith.addf %188, %190 : vector<1x8x128xf32>
    %192 = arith.addf %186, %191 : vector<1x8x128xf32>
    %193 = vector.broadcast %67 : f32 to vector<1x8x128xf32>
    %194 = arith.mulf %193, %173 : vector<1x8x128xf32>
    %195 = vector.broadcast %76 : f32 to vector<1x8x128xf32>
    %196 = arith.mulf %195, %181 : vector<1x8x128xf32>
    %197 = arith.addf %194, %196 : vector<1x8x128xf32>
    %198 = arith.addf %192, %197 : vector<1x8x128xf32>
    %c1_i32_55 = arith.constant 1 : i32
    %199 = tpu.dynamic_rotate %198 by %c1_i32_55 dim 1 : vector<1x8x128xf32>, i32 -> vector<1x8x128xf32>
    %200 = vector.shape_cast %60 : vector<8x1xf32> to vector<1x8x1xf32>
    %201 = vector.broadcast %200 : vector<1x8x1xf32> to vector<1x8x128xf32>
    %202 = arith.mulf %199, %201 : vector<1x8x128xf32>
    %203 = vector.broadcast %68 : f32 to vector<1x8x128xf32>
    %204 = arith.mulf %203, %169 : vector<1x8x128xf32>
    %205 = vector.broadcast %77 : f32 to vector<1x8x128xf32>
    %206 = arith.mulf %205, %177 : vector<1x8x128xf32>
    %207 = arith.addf %204, %206 : vector<1x8x128xf32>
    %208 = vector.broadcast %69 : f32 to vector<1x8x128xf32>
    %209 = arith.mulf %208, %46 : vector<1x8x128xf32>
    %210 = vector.broadcast %78 : f32 to vector<1x8x128xf32>
    %211 = arith.mulf %210, %38 : vector<1x8x128xf32>
    %212 = arith.addf %209, %211 : vector<1x8x128xf32>
    %213 = arith.addf %207, %212 : vector<1x8x128xf32>
    %214 = vector.broadcast %70 : f32 to vector<1x8x128xf32>
    %215 = arith.mulf %214, %173 : vector<1x8x128xf32>
    %216 = vector.broadcast %79 : f32 to vector<1x8x128xf32>
    %217 = arith.mulf %216, %181 : vector<1x8x128xf32>
    %218 = arith.addf %215, %217 : vector<1x8x128xf32>
    %219 = arith.addf %213, %218 : vector<1x8x128xf32>
    %220 = arith.addf %202, %219 : vector<1x8x128xf32>
    %221 = vector.broadcast %71 : f32 to vector<1x8x128xf32>
    %222 = arith.mulf %221, %169 : vector<1x8x128xf32>
    %223 = vector.broadcast %80 : f32 to vector<1x8x128xf32>
    %224 = arith.mulf %223, %177 : vector<1x8x128xf32>
    %225 = arith.addf %222, %224 : vector<1x8x128xf32>
    %226 = vector.broadcast %72 : f32 to vector<1x8x128xf32>
    %227 = arith.mulf %226, %46 : vector<1x8x128xf32>
    %228 = vector.broadcast %81 : f32 to vector<1x8x128xf32>
    %229 = arith.mulf %228, %38 : vector<1x8x128xf32>
    %230 = arith.addf %227, %229 : vector<1x8x128xf32>
    %231 = arith.addf %225, %230 : vector<1x8x128xf32>
    %232 = vector.broadcast %73 : f32 to vector<1x8x128xf32>
    %233 = arith.mulf %232, %173 : vector<1x8x128xf32>
    %234 = vector.broadcast %82 : f32 to vector<1x8x128xf32>
    %235 = arith.mulf %234, %181 : vector<1x8x128xf32>
    %236 = arith.addf %233, %235 : vector<1x8x128xf32>
    %237 = arith.addf %231, %236 : vector<1x8x128xf32>
    %c7_i32_56 = arith.constant 7 : i32
    %238 = tpu.dynamic_rotate %237 by %c7_i32_56 dim 1 : vector<1x8x128xf32>, i32 -> vector<1x8x128xf32>
    %239 = vector.shape_cast %64 : vector<8x1xf32> to vector<1x8x1xf32>
    %240 = vector.broadcast %239 : vector<1x8x1xf32> to vector<1x8x128xf32>
    %241 = arith.mulf %238, %240 : vector<1x8x128xf32>
    %242 = arith.addf %220, %241 : vector<1x8x128xf32>
    %243 = vector.broadcast %83 : f32 to vector<1x8x128xf32>
    %244 = arith.addf %242, %243 : vector<1x8x128xf32>
    %245 = math.tanh %244 : vector<1x8x128xf32>
    %246 = vector.extract_strided_slice %245 {offsets = [0, 0, 0], sizes = [1, 8, 32], strides = [1, 1, 1]} : vector<1x8x128xf32> to vector<1x8x32xf32>
    %c0_57 = arith.constant 0 : index
    %c0_58 = arith.constant 0 : index
    %c0_59 = arith.constant 0 : index
    %247 = vector.load %arg9[%c0_57, %c0_58, %c0_59] : memref<1x8x32xf32, #tpu.memory_space<vmem>>, vector<1x8x32xf32>
    tpu.vector_store %arg9[%c0_57, %c0_58, %c0_59], %246 {strides = array<i32>} : memref<1x8x32xf32, #tpu.memory_space<vmem>>, vector<1x8x32xf32>,
    return
  }
  func.func @transform_0(%arg0: i32) -> (i32, i32, i32) {
    %c0_i32 = arith.constant 0 : i32
    %c0_i32_0 = arith.constant 0 : i32
    %c0_i32_1 = arith.constant 0 : i32
    return %arg0, %c0_i32, %c0_i32_0 : i32, i32, i32
  }
  func.func @transform_1(%arg0: i32) -> (i32, i32, i32) {
    %c0_i32 = arith.constant 0 : i32
    %c0_i32_0 = arith.constant 0 : i32
    %c0_i32_1 = arith.constant 0 : i32
    return %arg0, %c0_i32, %c0_i32_0 : i32, i32, i32
  }
  func.func @transform_2(%arg0: i32) -> (i32, i32, i32) {
    %c0_i32 = arith.constant 0 : i32
    %c0_i32_0 = arith.constant 0 : i32
    %c0_i32_1 = arith.constant 0 : i32
    return %arg0, %c0_i32, %c0_i32_0 : i32, i32, i32
  }
  func.func @transform_3(%arg0: i32) -> (i32, i32, i32) {
    %c0_i32 = arith.constant 0 : i32
    %c0_i32_0 = arith.constant 0 : i32
    %c0_i32_1 = arith.constant 0 : i32
    return %arg0, %c0_i32, %c0_i32_0 : i32, i32, i32
  }
  func.func @transform_4(%arg0: i32) -> (i32, i32) {
    %c0_i32 = arith.constant 0 : i32
    %c0_i32_0 = arith.constant 0 : i32
    %c0_i32_1 = arith.constant 0 : i32
    return %c0_i32, %c0_i32_0 : i32, i32
  }
  func.func @transform_5(%arg0: i32) -> i32 {
    %c0_i32 = arith.constant 0 : i32
    %c0_i32_0 = arith.constant 0 : i32
    return %c0_i32 : i32
  }
  func.func @transform_6(%arg0: i32) -> i32 {
    %c0_i32 = arith.constant 0 : i32
    %c0_i32_0 = arith.constant 0 : i32
    return %c0_i32 : i32
  }
  func.func @transform_7(%arg0: i32) -> (i32, i32, i32) {
    %c0_i32 = arith.constant 0 : i32
    %c0_i32_0 = arith.constant 0 : i32
    %c0_i32_1 = arith.constant 0 : i32
    return %arg0, %c0_i32, %c0_i32_0 : i32, i32, i32
  }
  func.func @transform_8(%arg0: i32) -> (i32, i32, i32) {
    %c0_i32 = arith.constant 0 : i32
    %c0_i32_0 = arith.constant 0 : i32
    %c0_i32_1 = arith.constant 0 : i32
    return %arg0, %c0_i32, %c0_i32_0 : i32, i32, i32
  }
}

</mosaic_0001>

<llo_original>
// kernel: tpu_custom_call.1
$region0: #{tpu_custom_call.1}
  #allocation0 [shape = 'u32[]', space=smem, size = 0x4, offset = 0x4, fixed_abs, tag = 'smem constant byte address 0x4 - core index']
  #allocation1 [shape = 'u32[72,128]{1,0:T(1,128)}', space=vmem, size = 0x9000, scoped, tag = 'internal scratch']
  #allocation2 [shape = 'f32[1,8,128]{2,1,0:T(8,128)}', space=vmem, size = 0x1000, scoped, tag = 'scratch operand']
  #allocation3 [shape = 'f32[1,8,128]{2,1,0:T(8,128)}', space=vmem, size = 0x1000, scoped, tag = 'scratch operand']
  #allocation4 [shape = 'f32[1]{0:T(128)S(6)}', space=smem, size = 0x200, scoped, tag = 'scoped memory for tpu_custom_call.1']
  %s0 = inlined_call_operand.vmem [shape: f32[2,8,32], index: 0, kind: input, shape index: {}]
  %s1 = inlined_call_operand.vmem [shape: f32[2,8,32], index: 1, kind: input, shape index: {}]
  %s2 = inlined_call_operand.vmem [shape: f32[2,8,1], index: 2, kind: input, shape index: {}]
  %s3 = inlined_call_operand.vmem [shape: f32[2,8,1], index: 3, kind: input, shape index: {}]
  %s4 = inlined_call_operand.hbm [shape: f32[8,128], index: 4, kind: input, shape index: {}]
  %s5 = inlined_call_operand.vmem [shape: f32[18], index: 5, kind: input, shape index: {}]
  %s6 = inlined_call_operand.<no memory space> [shape: f32[1], index: 6, kind: input, shape index: {}]
  %s7 = inlined_call_operand.hbm [shape: f32[2,8,32], index: 7, kind: output, shape index: {0}]
  %s8 = inlined_call_operand.hbm [shape: f32[2,8,32], index: 8, kind: output, shape index: {1}]
  %9 = xla_tuple %s7, %s8
  %s10 = sld [smem:[#allocation0]]
  $region77: #{tpu_custom_call.1} parent=0
    _
  %s12 = ssub.s32 1, %s10
  %s13 = scalar_select 0, %s12, %s10
  %14 = sst [smem:[#allocation4]] %s6
  $region1: #{tpu_custom_call.1} parent=0
    #allocation5 [shape = 'u8[4096]{0}', space=vmem, size = 0x1000, scoped, tag = 'input window, operand 4, single buffered']
    #allocation6 [shape = 's32[2]{0}', space=sflag, size = 0x8, scoped, tag = 'scoped memory for tpu_custom_call.1']
    #allocation7 [shape = 's32[2]{0}', space=sflag, size = 0x8, scoped, tag = 'scoped memory for tpu_custom_call.1']
    #allocation8 [shape = 's32[2]{0}', space=sflag, size = 0x8, scoped, tag = 'scoped memory for tpu_custom_call.1']
    #allocation9 [shape = 'u8[512]{0}', space=smem, size = 0x200, scoped, tag = 'input window, operand 5, single buffered']
    #allocation10 [shape = 'u8[8192]{0}', space=vmem, size = 0x2000, scoped, tag = 'output window, operand 0']
    #allocation11 [shape = 'u8[8192]{0}', space=vmem, size = 0x2000, scoped, tag = 'output window, operand 1']
    #allocation12 [shape = 's32[2]{0}', space=sflag, size = 0x8, scoped, tag = 'scoped memory for tpu_custom_call.1']
    %15 = vsyncpa [#allocation6], 0
    %16 = vsyncpa [#allocation8], 0
    %17 = vsyncpa [#allocation7], 0
    %s18 = scalar_lea.sflag [#allocation7], 1
    %19 = vsyncpa %s18, 0
    %20 = vsyncpa [#allocation12], 0
    %s21 = scalar_lea.sflag [#allocation12], 1
    %22 = vsyncpa %s21, 0
    loop: start=0, step=1, limit=4
    $region2: #{tpu_custom_call.1} parent=1 // loop_pre_header
      _
    $region3: #{tpu_custom_call.1} parent=1 // loop_header
      %s24 = sphi 0, %s28
      %p25 = scmp.ge.s32.totalorder %s24, 4
      %s34 = sphi 0, %s36
      %s37 = sphi 0, %s34
      %s38 = sphi 0, %s37
      %s54 = sphi 0, %s38
      %s60 = sphi 0, %s62
      %s63 = sphi 0, %s60
      %s64 = sphi 0, %s63
      %s80 = sphi 0, %s64
      %s86 = sphi 0, %s88
      %s89 = sphi 0, %s86
      %s90 = sphi 0, %s89
      %s106 = sphi 0, %s90
      %s112 = sphi 0, %s114
      %s115 = sphi 0, %s112
      %s116 = sphi 0, %s115
      %s132 = sphi 0, %s116
      %s136 = sphi 0, %s136
      %s138 = sphi 0, %s136
      %s139 = sphi 0, %s138
      %s153 = sphi 0, %s139
      %s157 = sphi 0, %s157
      %s159 = sphi 0, %s157
      %s160 = sphi 0, %s159
      %s174 = sphi 0, %s160
      %s178 = sphi 0, %s178
      %s180 = sphi 0, %s178
      %s181 = sphi 0, %s180
      %s195 = sphi 0, %s181
      %s201 = sphi 0, %s203
      %s204 = sphi 0, %s201
      %s205 = sphi 0, %s204
      %s221 = sphi 0, %s205
      %s227 = sphi 0, %s229
      %s230 = sphi 0, %s227
      %s231 = sphi 0, %s230
      %s247 = sphi 0, %s231
    $region4: #{tpu_custom_call.1} parent=1 // loop_header_branch
      %27 = sbr.rel (%p25) target = $region8
    $region5: #{tpu_custom_call.1} parent=1 // loop_body
      %s29 = ssub.s32 %s24, 1
      %s30 = ssub.s32 %s24, 2
      %s31 = sadd.s32 %s24, 1
      %s32 = ssub.s32 %s24, %s31
      %p33 = scmp.eq.s32.totalorder %s32, 0
      %s35 = sadd.s32 %s34, 1
      %s36 = scalar_select %p33, %s34, %s35
      %p39 = pneg %p33
      %p40 = scmp.eq.s32.totalorder %s24, 1
      %p41 = por %p39, %p40
      %p42 = scmp.ne.s32.totalorder %s34, %s37
      %p43 = scmp.eq.s32.totalorder %s24, 0
      %p44 = por %p42, %p43
      %p45 = scmp.ne.s32.totalorder %s34, %s37
      %p46 = scmp.eq.s32.totalorder %s29, 1
      %p47 = por %p45, %p46
      %p48 = scmp.ne.s32.totalorder %s37, %s38
      %p49 = scmp.eq.s32.totalorder %s29, 0
      %p50 = por %p48, %p49
      %p51 = scmp.ne.s32.totalorder %s37, %s38
      %p52 = scmp.eq.s32.totalorder %s30, 1
      %p53 = por %p51, %p52
      %p55 = scmp.ne.s32.totalorder %s38, %s54
      %p56 = scmp.eq.s32.totalorder %s30, 0
      %p57 = por %p55, %p56
      %s58 = ssub.s32 %s24, %s31
      %p59 = scmp.eq.s32.totalorder %s58, 0
      %s61 = sadd.s32 %s60, 1
      %s62 = scalar_select %p59, %s60, %s61
      %p65 = pneg %p59
      %p66 = scmp.eq.s32.totalorder %s24, 1
      %p67 = por %p65, %p66
      %p68 = scmp.ne.s32.totalorder %s60, %s63
      %p69 = scmp.eq.s32.totalorder %s24, 0
      %p70 = por %p68, %p69
      %p71 = scmp.ne.s32.totalorder %s60, %s63
      %p72 = scmp.eq.s32.totalorder %s29, 1
      %p73 = por %p71, %p72
      %p74 = scmp.ne.s32.totalorder %s63, %s64
      %p75 = scmp.eq.s32.totalorder %s29, 0
      %p76 = por %p74, %p75
      %p77 = scmp.ne.s32.totalorder %s63, %s64
      %p78 = scmp.eq.s32.totalorder %s30, 1
      %p79 = por %p77, %p78
      %p81 = scmp.ne.s32.totalorder %s64, %s80
      %p82 = scmp.eq.s32.totalorder %s30, 0
      %p83 = por %p81, %p82
      %s84 = ssub.s32 %s24, %s31
      %p85 = scmp.eq.s32.totalorder %s84, 0
      %s87 = sadd.s32 %s86, 1
      %s88 = scalar_select %p85, %s86, %s87
      %p91 = pneg %p85
      %p92 = scmp.eq.s32.totalorder %s24, 1
      %p93 = por %p91, %p92
      %p94 = scmp.ne.s32.totalorder %s86, %s89
      %p95 = scmp.eq.s32.totalorder %s24, 0
      %p96 = por %p94, %p95
      %p97 = scmp.ne.s32.totalorder %s86, %s89
      %p98 = scmp.eq.s32.totalorder %s29, 1
      %p99 = por %p97, %p98
      %p100 = scmp.ne.s32.totalorder %s89, %s90
      %p101 = scmp.eq.s32.totalorder %s29, 0
      %p102 = por %p100, %p101
      %p103 = scmp.ne.s32.totalorder %s89, %s90
      %p104 = scmp.eq.s32.totalorder %s30, 1
      %p105 = por %p103, %p104
      %p107 = scmp.ne.s32.totalorder %s90, %s106
      %p108 = scmp.eq.s32.totalorder %s30, 0
      %p109 = por %p107, %p108
      %s110 = ssub.s32 %s24, %s31
      %p111 = scmp.eq.s32.totalorder %s110, 0
      %s113 = sadd.s32 %s112, 1
      %s114 = scalar_select %p111, %s112, %s113
      %p117 = pneg %p111
      %p118 = scmp.eq.s32.totalorder %s24, 1
      %p119 = por %p117, %p118
      %p120 = scmp.ne.s32.totalorder %s112, %s115
      %p121 = scmp.eq.s32.totalorder %s24, 0
      %p122 = por %p120, %p121
      %p123 = scmp.ne.s32.totalorder %s112, %s115
      %p124 = scmp.eq.s32.totalorder %s29, 1
      %p125 = por %p123, %p124
      %p126 = scmp.ne.s32.totalorder %s115, %s116
      %p127 = scmp.eq.s32.totalorder %s29, 0
      %p128 = por %p126, %p127
      %p129 = scmp.ne.s32.totalorder %s115, %s116
      %p130 = scmp.eq.s32.totalorder %s30, 1
      %p131 = por %p129, %p130
      %p133 = scmp.ne.s32.totalorder %s116, %s132
      %p134 = scmp.eq.s32.totalorder %s30, 0
      %p135 = por %p133, %p134
      %s137 = sadd.s32 %s136, 1
      %p140 = scmp.eq.s32.totalorder %s24, 1
      %p141 = scmp.ne.s32.totalorder %s136, %s138
      %p142 = scmp.eq.s32.totalorder %s24, 0
      %p143 = por %p141, %p142
      %p144 = scmp.ne.s32.totalorder %s136, %s138
      %p145 = scmp.eq.s32.totalorder %s29, 1
      %p146 = por %p144, %p145
      %p147 = scmp.ne.s32.totalorder %s138, %s139
      %p148 = scmp.eq.s32.totalorder %s29, 0
      %p149 = por %p147, %p148
      %p150 = scmp.ne.s32.totalorder %s138, %s139
      %p151 = scmp.eq.s32.totalorder %s30, 1
      %p152 = por %p150, %p151
      %p154 = scmp.ne.s32.totalorder %s139, %s153
      %p155 = scmp.eq.s32.totalorder %s30, 0
      %p156 = por %p154, %p155
      %s158 = sadd.s32 %s157, 1
      %p161 = scmp.eq.s32.totalorder %s24, 1
      %p162 = scmp.ne.s32.totalorder %s157, %s159
      %p163 = scmp.eq.s32.totalorder %s24, 0
      %p164 = por %p162, %p163
      %p165 = scmp.ne.s32.totalorder %s157, %s159
      %p166 = scmp.eq.s32.totalorder %s29, 1
      %p167 = por %p165, %p166
      %p168 = scmp.ne.s32.totalorder %s159, %s160
      %p169 = scmp.eq.s32.totalorder %s29, 0
      %p170 = por %p168, %p169
      %p171 = scmp.ne.s32.totalorder %s159, %s160
      %p172 = scmp.eq.s32.totalorder %s30, 1
      %p173 = por %p171, %p172
      %p175 = scmp.ne.s32.totalorder %s160, %s174
      %p176 = scmp.eq.s32.totalorder %s30, 0
      %p177 = por %p175, %p176
      %s179 = sadd.s32 %s178, 1
      %p182 = scmp.eq.s32.totalorder %s24, 1
      %p183 = scmp.ne.s32.totalorder %s178, %s180
      %p184 = scmp.eq.s32.totalorder %s24, 0
      %p185 = por %p183, %p184
      %p186 = scmp.ne.s32.totalorder %s178, %s180
      %p187 = scmp.eq.s32.totalorder %s29, 1
      %p188 = por %p186, %p187
      %p189 = scmp.ne.s32.totalorder %s180, %s181
      %p190 = scmp.eq.s32.totalorder %s29, 0
      %p191 = por %p189, %p190
      %p192 = scmp.ne.s32.totalorder %s180, %s181
      %p193 = scmp.eq.s32.totalorder %s30, 1
      %p194 = por %p192, %p193
      %p196 = scmp.ne.s32.totalorder %s181, %s195
      %p197 = scmp.eq.s32.totalorder %s30, 0
      %p198 = por %p196, %p197
      %s199 = ssub.s32 %s24, %s31
      %p200 = scmp.eq.s32.totalorder %s199, 0
      %s202 = sadd.s32 %s201, 1
      %s203 = scalar_select %p200, %s201, %s202
      %p206 = pneg %p200
      %p207 = scmp.eq.s32.totalorder %s24, 1
      %p208 = por %p206, %p207
      %p209 = scmp.ne.s32.totalorder %s201, %s204
      %p210 = scmp.eq.s32.totalorder %s24, 0
      %p211 = por %p209, %p210
      %p212 = scmp.ne.s32.totalorder %s201, %s204
      %p213 = scmp.eq.s32.totalorder %s29, 1
      %p214 = por %p212, %p213
      %p215 = scmp.ne.s32.totalorder %s204, %s205
      %p216 = scmp.eq.s32.totalorder %s29, 0
      %p217 = por %p215, %p216
      %p218 = scmp.ne.s32.totalorder %s204, %s205
      %p219 = scmp.eq.s32.totalorder %s30, 1
      %p220 = por %p218, %p219
      %p222 = scmp.ne.s32.totalorder %s205, %s221
      %p223 = scmp.eq.s32.totalorder %s30, 0
      %p224 = por %p222, %p223
      %s225 = ssub.s32 %s24, %s31
      %p226 = scmp.eq.s32.totalorder %s225, 0
      %s228 = sadd.s32 %s227, 1
      %s229 = scalar_select %p226, %s227, %s228
      %p232 = pneg %p226
      %p233 = scmp.eq.s32.totalorder %s24, 1
      %p234 = por %p232, %p233
      %p235 = scmp.ne.s32.totalorder %s227, %s230
      %p236 = scmp.eq.s32.totalorder %s24, 0
      %p237 = por %p235, %p236
      %p238 = scmp.ne.s32.totalorder %s227, %s230
      %p239 = scmp.eq.s32.totalorder %s29, 1
      %p240 = por %p238, %p239
      %p241 = scmp.ne.s32.totalorder %s230, %s231
      %p242 = scmp.eq.s32.totalorder %s29, 0
      %p243 = por %p241, %p242
      %p244 = scmp.ne.s32.totalorder %s230, %s231
      %p245 = scmp.eq.s32.totalorder %s30, 1
      %p246 = por %p244, %p245
      %p248 = scmp.ne.s32.totalorder %s231, %s247
      %p249 = scmp.eq.s32.totalorder %s30, 0
      %p250 = por %p248, %p249
      %p251 = scmp.le.s32.totalorder 1, %s24
      %p252 = scmp.lt.s32.totalorder %s24, 3
      %p253 = pnand %p251, %p252
      %p254 = pneg %p253
      // Predicated region
      $region9: #{tpu_custom_call.1} parent=5 // pred_check
        _
      $region10: #{tpu_custom_call.1} parent=5 // pred_check_branch
        %256 = sbr.rel (%p253) target = $region12
      $region11: #{tpu_custom_call.1} parent=5 // pred_region
        %s257 = ssub.s32 %s24, 1
        // Predicated region
        $region13: #{tpu_custom_call.1} parent=11 // pred_check
          %p258 = pneg %p149
        $region14: #{tpu_custom_call.1} parent=11 // pred_check_branch
          %260 = sbr.rel (%p258) target = $region16
        $region15: #{tpu_custom_call.1} parent=11 // pred_region
          %262 = vsyncadd [#allocation6], 0
          %s264 = sshll.u32 %s4, 4
          %s265 = int_to_ptr.hbm [resolvable:$true] %s264
          %s266 = sshll.u32 [#allocation5], 4
          %s267 = int_to_ptr.vmem [resolvable:$true] %s266
          %269 = dma.hbm_to_vmem [thread:$0]  %s265, 128, %s267, [#allocation6]
        $region16: #{tpu_custom_call.1} parent=11 // pred_fallthru
          _
        // Predicated region
        $region17: #{tpu_custom_call.1} parent=11 // pred_check
          %p270 = pneg %p170
        $region18: #{tpu_custom_call.1} parent=11 // pred_check_branch
          %272 = sbr.rel (%p270) target = $region20
        $region19: #{tpu_custom_call.1} parent=11 // pred_region
          %274 = vsyncadd [#allocation8], 0
          %s276 = sshll.u32 %s5, 4
          %s277 = int_to_ptr.vmem [resolvable:$true] %s276
          %279 = dma.vmem_to_smem %s277, 16, [#allocation9], [#allocation8]
        $region20: #{tpu_custom_call.1} parent=11 // pred_fallthru
          _
        // Predicated region
        $region21: #{tpu_custom_call.1} parent=11 // pred_check
          %p280 = pneg %p191
        $region22: #{tpu_custom_call.1} parent=11 // pred_check_branch
          %282 = sbr.rel (%p280) target = $region24
        $region23: #{tpu_custom_call.1} parent=11 // pred_region
          _
        $region24: #{tpu_custom_call.1} parent=11 // pred_fallthru
          _
      $region12: #{tpu_custom_call.1} parent=5 // pred_fallthru
        _
      %p283 = scmp.lt.s32.totalorder %s24, 2
      // Predicated region
      $region25: #{tpu_custom_call.1} parent=5 // pred_check
        %p284 = pneg %p283
      $region26: #{tpu_custom_call.1} parent=5 // pred_check_branch
        %286 = sbr.rel (%p284) target = $region28
      $region27: #{tpu_custom_call.1} parent=5 // pred_region
        // Predicated region
        $region29: #{tpu_custom_call.1} parent=27 // pred_check
          %p287 = pneg %p44
        $region30: #{tpu_custom_call.1} parent=27 // pred_check_branch
          %289 = sbr.rel (%p287) target = $region32
        $region31: #{tpu_custom_call.1} parent=27 // pred_region
          %p290 = scmp.lt.s32.totalorder %s24, 1
          %s291 = scalar_select %p290, %s24, 1
          %s292 = smul.addr %s291, 8
          %s293 = scalar_lea.vmem %s0, %s292
        $region32: #{tpu_custom_call.1} parent=27 // pred_fallthru
          _
        // Predicated region
        $region33: #{tpu_custom_call.1} parent=27 // pred_check
          %p294 = pneg %p70
        $region34: #{tpu_custom_call.1} parent=27 // pred_check_branch
          %296 = sbr.rel (%p294) target = $region36
        $region35: #{tpu_custom_call.1} parent=27 // pred_region
          %p297 = scmp.lt.s32.totalorder %s24, 1
          %s298 = scalar_select %p297, %s24, 1
          %s299 = smul.addr %s298, 8
          %s300 = scalar_lea.vmem %s1, %s299
        $region36: #{tpu_custom_call.1} parent=27 // pred_fallthru
          _
        // Predicated region
        $region37: #{tpu_custom_call.1} parent=27 // pred_check
          %p301 = pneg %p96
        $region38: #{tpu_custom_call.1} parent=27 // pred_check_branch
          %303 = sbr.rel (%p301) target = $region40
        $region39: #{tpu_custom_call.1} parent=27 // pred_region
          %p304 = scmp.lt.s32.totalorder %s24, 1
          %s305 = scalar_select %p304, %s24, 1
          %s306 = smul.addr %s305, 8
          %s307 = scalar_lea.vmem %s2, %s306
        $region40: #{tpu_custom_call.1} parent=27 // pred_fallthru
          _
        // Predicated region
        $region41: #{tpu_custom_call.1} parent=27 // pred_check
          %p308 = pneg %p122
        $region42: #{tpu_custom_call.1} parent=27 // pred_check_branch
          %310 = sbr.rel (%p308) target = $region44
        $region43: #{tpu_custom_call.1} parent=27 // pred_region
          %p311 = scmp.lt.s32.totalorder %s24, 1
          %s312 = scalar_select %p311, %s24, 1
          %s313 = smul.addr %s312, 8
          %s314 = scalar_lea.vmem %s3, %s313
        $region44: #{tpu_custom_call.1} parent=27 // pred_fallthru
          _
      $region28: #{tpu_custom_call.1} parent=5 // pred_fallthru
        _
      %p315 = scmp.le.s32.totalorder 1, %s24
      %p316 = scmp.lt.s32.totalorder %s24, 3
      %p317 = pnand %p315, %p316
      %p318 = pneg %p317
      // Predicated region
      $region45: #{tpu_custom_call.1} parent=5 // pred_check
        _
      $region46: #{tpu_custom_call.1} parent=5 // pred_check_branch
        %320 = sbr.rel (%p317) target = $region48
      $region47: #{tpu_custom_call.1} parent=5 // pred_region
        %s321 = ssub.s32 %s24, 1
        // Predicated region
        $region49: #{tpu_custom_call.1} parent=47 // pred_check
          %p322 = pneg %p149
        $region50: #{tpu_custom_call.1} parent=47 // pred_check_branch
          %324 = sbr.rel (%p322) target = $region52
        $region51: #{tpu_custom_call.1} parent=47 // pred_region
          %326 = dma.done [#allocation6], 128
        $region52: #{tpu_custom_call.1} parent=47 // pred_fallthru
          _
        // Predicated region
        $region53: #{tpu_custom_call.1} parent=47 // pred_check
          %p327 = pneg %p170
        $region54: #{tpu_custom_call.1} parent=47 // pred_check_branch
          %329 = sbr.rel (%p327) target = $region56
        $region55: #{tpu_custom_call.1} parent=47 // pred_region
          %331 = dma.done [#allocation8], 16
        $region56: #{tpu_custom_call.1} parent=47 // pred_fallthru
          _
        %332 = sfence
        %p333 = scmp.lt.s32.totalorder %s29, 1
        %s334 = scalar_select %p333, %s29, 1
        %s335 = smul.addr %s334, 8
        %s336 = scalar_lea.vmem %s0, %s335
        %p337 = pneg %p50
        %p338 = pneg %p47
        %p339 = scmp.lt.s32.totalorder %s29, 1
        %s340 = scalar_select %p339, %s29, 1
        %s341 = smul.addr %s340, 8
        %s342 = scalar_lea.vmem %s1, %s341
        %p343 = pneg %p76
        %p344 = pneg %p73
        %p345 = scmp.lt.s32.totalorder %s29, 1
        %s346 = scalar_select %p345, %s29, 1
        %s347 = smul.addr %s346, 8
        %s348 = scalar_lea.vmem %s2, %s347
        %p349 = pneg %p102
        %p350 = pneg %p99
        %p351 = scmp.lt.s32.totalorder %s29, 1
        %s352 = scalar_select %p351, %s29, 1
        %s353 = smul.addr %s352, 8
        %s354 = scalar_lea.vmem %s3, %s353
        %p355 = pneg %p128
        %p356 = pneg %p125
        %p357 = pneg %p149
        %p358 = pneg %p146
        %p359 = pneg %p170
        %p360 = pneg %p167
        %p361 = pneg %p191
        %p362 = pneg %p188
        %p363 = pneg %p217
        %p364 = pneg %p214
        %s365 = sand.u32 %s204, 1
        %s366 = scalar_lea.sflag [#allocation7], %s365
        %s367 = sand.u32 %s204, 1
        %s368 = smul.addr %s367, 8
        %s369 = scalar_lea.vmem [#allocation10], %s368
        %p370 = pneg %p243
        %p371 = pneg %p240
        %s372 = sand.u32 %s230, 1
        %s373 = scalar_lea.sflag [#allocation12], %s372
        %s374 = sand.u32 %s230, 1
        %s375 = smul.addr %s374, 8
        %s376 = scalar_lea.vmem [#allocation11], %s375
        %p377 = scmp.lt.s32.totalorder %s29, 1
        %s378 = scalar_select %p377, %s29, 1
        %s379 = smul.addr %s378, 8
        %s380 = scalar_lea.vmem %s0, %s379
        %p381 = scmp.lt.s32.totalorder %s29, 1
        %s382 = scalar_select %p381, %s29, 1
        %s383 = smul.addr %s382, 8
        %s384 = scalar_lea.vmem %s1, %s383
        %p385 = scmp.lt.s32.totalorder %s29, 1
        %s386 = scalar_select %p385, %s29, 1
        %s387 = smul.addr %s386, 8
        %s388 = scalar_lea.vmem %s2, %s387
        %p389 = scmp.lt.s32.totalorder %s29, 1
        %s390 = scalar_select %p389, %s29, 1
        %s391 = smul.addr %s390, 8
        %s392 = scalar_lea.vmem %s3, %s391
        %v393 = vld [vmem:[%s380] sm:$0xff]
        %v394 = vld [vmem:[%s384] sm:$0xff]
        %v395 = vld [vmem:[%s388] sm:$0xff]
        %v396 = vld [vmem:[%s392] sm:$0xff]
        %v397 = vld [vmem:[#allocation5] sm:$0xff]
        %399 = vset.pattern.permute.xlu0 0
        %400 = vperm.xlu0 %399, %v395
        %v401 = vpop.permute.xlu0 %400
        %v403 = vmul.f32 %v393, %v401
        %405 = vset.pattern.permute.xlu0 0
        %406 = vperm.xlu0 %405, %v396
        %v407 = vpop.permute.xlu0 %406
        %v409 = vmul.f32 %v394, %v407
        %vm410 = vcmask 261120
        %v412 = vsel %vm410, %v403, 0
        %v415 = vsel %vm410, %v409, 0
        %417 = vmatpush.xpose.msra.mxu0 0.0
        %418 = vmatpush.xpose.msra.mxu0 0.0
        %419 = vmatpush.xpose.msra.mxu0 0.0
        %420 = vmatpush.xpose.msra.mxu0 0.0
        %421 = vmatpush.xpose.msra.mxu0 0.0
        %422 = vmatpush.xpose.msra.mxu0 0.0
        %423 = vmatpush.xpose.msra.mxu0 0.0
        %424 = vmatpush.xpose.msra.mxu0 0.0
        %425 = vmatpush.xpose.msra.mxu0 0.0
        %426 = vmatpush.xpose.msra.mxu0 0.0
        %427 = vmatpush.xpose.msra.mxu0 0.0
        %428 = vmatpush.xpose.msra.mxu0 0.0
        %429 = vmatpush.xpose.msra.mxu0 0.0
        %430 = vmatpush.xpose.msra.mxu0 0.0
        %431 = vmatpush.xpose.msra.mxu0 0.0
        %432 = vmatpush.xpose.msra.mxu0 %v415
        %433 = vmatmul.f32.gmra.mxu0 %v412
        %v434 = vpop.f32.mrf.mxu0
        %v435 = vadd.f32 0.0, %v434
        %436 = vdwg.mxu0
        %v437 = vmul.f32 %v403, %v403
        %v438 = vsel %vm410, %v437, 0.0
        %439 = vadd.xlane.f32.xlu0 %v438
        %v440 = vpop.xlane.xlu0 %439
        %v441 = vmul.f32 %v409, %v409
        %v442 = vsel %vm410, %v441, 0.0
        %443 = vadd.xlane.f32.xlu0 %v442
        %v444 = vpop.xlane.xlu0 %443
        %445 = vxpose.xlu0.b32.start [1/16] %v444, 128
        %446 = vxpose.xlu0.b32.cont [2/16] 0.0, 128
        %447 = vxpose.xlu0.b32.cont [3/16] 0.0, 128
        %448 = vxpose.xlu0.b32.cont [4/16] 0.0, 128
        %449 = vxpose.xlu0.b32.cont [5/16] 0.0, 128
        %450 = vxpose.xlu0.b32.cont [6/16] 0.0, 128
        %451 = vxpose.xlu0.b32.cont [7/16] 0.0, 128
        %452 = vxpose.xlu0.b32.cont [8/16] 0.0, 128
        %453 = vxpose.xlu0.b32.cont [9/16] 0.0, 128
        %454 = vxpose.xlu0.b32.cont [10/16] 0.0, 128
        %455 = vxpose.xlu0.b32.cont [11/16] 0.0, 128
        %456 = vxpose.xlu0.b32.cont [12/16] 0.0, 128
        %457 = vxpose.xlu0.b32.cont [13/16] 0.0, 128
        %458 = vxpose.xlu0.b32.cont [14/16] 0.0, 128
        %459 = vxpose.xlu0.b32.cont [15/16] 0.0, 128
        %460 = vxpose.xlu0.b32.end [16/16] 0.0, 128
        %v461 = vpop.trf.xlu0
        %v462 = vpop.trf.xlu0
        %v463 = vpop.trf.xlu0
        %v464 = vpop.trf.xlu0
        %v465 = vpop.trf.xlu0
        %v466 = vpop.trf.xlu0
        %v467 = vpop.trf.xlu0
        %v468 = vpop.trf.xlu0
        %v469 = vpop.trf.xlu0
        %v470 = vpop.trf.xlu0
        %v471 = vpop.trf.xlu0
        %v472 = vpop.trf.xlu0
        %v473 = vpop.trf.xlu0
        %v474 = vpop.trf.xlu0
        %v475 = vpop.trf.xlu0
        %v476 = vpop.trf.xlu0
        %v477 = vperm.slane %v461, 0
        %v478 = vadd.f32 %v440, %v477
        %v479 = vmul.f32 %v435, 2.0
        %v480 = vsub.f32 %v478, %v479
        %v481 = vmax.f32 %v480, 0.0
        %v482 = vrsqrt.pop %v481
        %v483 = vmul.f32 %v482, %v481
        %v484 = vmul.f32 %v483, %v482
        %v485 = vmul.f32 0.5, %v484
        %v486 = vsub.f32 1.5, %v485
        %v487 = vmul.f32 %v482, %v486
        %v488 = vmul.f32 %v481, %v487
        %vm489 = vcmp.eq.f32.partialorder %v481, inf
        %v490 = vsel %vm489, %v481, %v488
        %vm491 = vcmp.eq.f32.partialorder %v481, 0.0
        %v492 = vand.u32 %v481, 2147483648
        %v493 = vsel %vm491, %v492, %v490
        %v494 = vadd.f32 %v493, 1.0
        %v495 = vrcp.pop %v494
        %v496 = vmul.f32 %v494, %v495
        %v497 = vsub.f32 1.0, %v496
        %v498 = vmul.f32 %v495, %v497
        %v499 = vadd.f32 %v495, %v498
        %vm500 = vweird.f32 %v494
        %vm501 = vweird.f32 %v495
        %vm502 = vmor %vm500, %vm501
        %v503 = vsel %vm502, %v495, %v499
        %v504 = vand.u32 2147483647, %v494
        %vm505 = vcmp.eq.f32.partialorder %v504, 8.507059e+37
        %v506 = vand.u32 %v494, 2147483648
        %v507 = vor.u32 1.1754944e-38, %v506
        %v508 = vsel %vm505, %v507, %v503
        %v509 = vmul.f32 1.0, %v508
        %510 = vxpose.xlu0.b32.start [1/16] %v509, 128
        %511 = vxpose.xlu0.b32.cont [2/16] 0.0, 128
        %512 = vxpose.xlu0.b32.cont [3/16] 0.0, 128
        %513 = vxpose.xlu0.b32.cont [4/16] 0.0, 128
        %514 = vxpose.xlu0.b32.cont [5/16] 0.0, 128
        %515 = vxpose.xlu0.b32.cont [6/16] 0.0, 128
        %516 = vxpose.xlu0.b32.cont [7/16] 0.0, 128
        %517 = vxpose.xlu0.b32.cont [8/16] 0.0, 128
        %518 = vxpose.xlu0.b32.cont [9/16] 0.0, 128
        %519 = vxpose.xlu0.b32.cont [10/16] 0.0, 128
        %520 = vxpose.xlu0.b32.cont [11/16] 0.0, 128
        %521 = vxpose.xlu0.b32.cont [12/16] 0.0, 128
        %522 = vxpose.xlu0.b32.cont [13/16] 0.0, 128
        %523 = vxpose.xlu0.b32.cont [14/16] 0.0, 128
        %524 = vxpose.xlu0.b32.cont [15/16] 0.0, 128
        %525 = vxpose.xlu0.b32.end [16/16] 0.0, 128
        %v526 = vpop.trf.xlu0
        %v527 = vpop.trf.xlu0
        %v528 = vpop.trf.xlu0
        %v529 = vpop.trf.xlu0
        %v530 = vpop.trf.xlu0
        %v531 = vpop.trf.xlu0
        %v532 = vpop.trf.xlu0
        %v533 = vpop.trf.xlu0
        %v534 = vpop.trf.xlu0
        %v535 = vpop.trf.xlu0
        %v536 = vpop.trf.xlu0
        %v537 = vpop.trf.xlu0
        %v538 = vpop.trf.xlu0
        %v539 = vpop.trf.xlu0
        %v540 = vpop.trf.xlu0
        %v541 = vpop.trf.xlu0
        %vm542 = vcmask 64512
        %v544 = vsel %vm542, %v509, 0
        %v547 = vsel %vm542, %v526, 0
        %549 = vmatpush.msra.mxu0 0.0
        %550 = vmatpush.msra.mxu0 0.0
        %551 = vmatpush.msra.mxu0 0.0
        %552 = vmatpush.msra.mxu0 0.0
        %553 = vmatpush.msra.mxu0 0.0
        %554 = vmatpush.msra.mxu0 0.0
        %555 = vmatpush.msra.mxu0 0.0
        %556 = vmatpush.msra.mxu0 0.0
        %557 = vmatpush.msra.mxu0 0.0
        %558 = vmatpush.msra.mxu0 0.0
        %559 = vmatpush.msra.mxu0 0.0
        %560 = vmatpush.msra.mxu0 0.0
        %561 = vmatpush.msra.mxu0 0.0
        %562 = vmatpush.msra.mxu0 0.0
        %563 = vmatpush.msra.mxu0 0.0
        %564 = vmatpush.msra.mxu0 %v397
        %565 = vmatmul.f32.gmra.mxu0 %v544
        %v566 = vpop.f32.mrf.mxu0
        %v567 = vadd.f32 0.0, %v566
        %568 = vmatmul.f32.gmra.mxu0 %v547
        %v569 = vpop.f32.mrf.mxu0
        %v570 = vadd.f32 0.0, %v569
        %571 = vdwg.mxu0
        %572 = vst [vmem:[#allocation2] sm:$0xff] 0.0
        %573 = vst [vmem:[#allocation3] sm:$0xff] 0.0
        %574 = vst.msk [vmem:[#allocation2] sm:$0xff] %vm410, %v393
        %575 = vst.msk [vmem:[#allocation3] sm:$0xff] %vm410, %v394
        %v576 = vld [vmem:[#allocation2] sm:$0xff]
        %v577 = vld [vmem:[#allocation3] sm:$0xff]
        %v578 = vlaneseq
        %v579 = vand.u32 %v578, 127
        %v580 = vlaneseq
        %v581 = vshrl.u32 %v580, 7
        %vm582 = vcmp.gt.s32.totalorder %v579, 0
        %v583 = vsel %vm582, 1, 0
        %v584 = vcvt.s32.f32 %v583
        %vm585 = vcmp.lt.s32.totalorder %v579, 127
        %v586 = vsel %vm585, 1, 0
        %v587 = vcvt.s32.f32 %v586
        %vm588 = vcmp.gt.s32.totalorder %v581, 0
        %v589 = vsel %vm588, 1, 0
        %v590 = vcvt.s32.f32 %v589
        %vm591 = vcmp.lt.s32.totalorder %v581, 7
        %v592 = vsel %vm591, 1, 0
        %v593 = vcvt.s32.f32 %v592
        %s594 = sld [smem:[#allocation9]]
        %s595 = sld [smem:[#allocation9 + $0x1]]
        %s596 = sld [smem:[#allocation9 + $0x2]]
        %s597 = sld [smem:[#allocation9 + $0x3]]
        %s598 = sld [smem:[#allocation9 + $0x4]]
        %s599 = sld [smem:[#allocation9 + $0x5]]
        %s600 = sld [smem:[#allocation9 + $0x6]]
        %s601 = sld [smem:[#allocation9 + $0x7]]
        %s602 = sld [smem:[#allocation9 + $0x8]]
        %s603 = sld [smem:[#allocation9 + $0x9]]
        %s604 = sld [smem:[#allocation9 + $0xa]]
        %s605 = sld [smem:[#allocation9 + $0xb]]
        %s606 = sld [smem:[#allocation9 + $0xc]]
        %s607 = sld [smem:[#allocation9 + $0xd]]
        %s608 = sld [smem:[#allocation9 + $0xe]]
        %s609 = sld [smem:[#allocation9 + $0xf]]
        %s610 = sld [smem:[#allocation9 + $0x10]]
        %s611 = sld [smem:[#allocation9 + $0x11]]
        %s612 = sld [smem:[#allocation4]]
        %613 = vrot.lane.b32.xlu0 %v576, 1
        %v614 = vpop.permute.xlu0 %613
        %v615 = vmul.f32 %v614, %v584
        %616 = vrot.lane.b32.xlu0 %v576, 127
        %v617 = vpop.permute.xlu0 %616
        %v618 = vmul.f32 %v617, %v587
        %619 = vrot.lane.b32.xlu0 %v567, 1
        %v620 = vpop.permute.xlu0 %619
        %v621 = vmul.f32 %v620, %v584
        %622 = vrot.lane.b32.xlu0 %v567, 127
        %v623 = vpop.permute.xlu0 %622
        %v624 = vmul.f32 %v623, %v587
        %v625 = vstv %s594
        %v626 = vmul.f32 %v625, %v615
        %v627 = vstv %s603
        %v628 = vmul.f32 %v627, %v621
        %v629 = vadd.f32 %v626, %v628
        %v630 = vstv %s595
        %v631 = vmul.f32 %v630, %v576
        %v632 = vstv %s604
        %v633 = vmul.f32 %v632, %v567
        %v634 = vadd.f32 %v631, %v633
        %v635 = vadd.f32 %v629, %v634
        %v636 = vstv %s596
        %v637 = vmul.f32 %v636, %v618
        %v638 = vstv %s605
        %v639 = vmul.f32 %v638, %v624
        %v640 = vadd.f32 %v637, %v639
        %v641 = vadd.f32 %v635, %v640
        %v642 = vrot.slane %v641, 7
        %v643 = vmul.f32 %v642, %v590
        %v644 = vstv %s597
        %v645 = vmul.f32 %v644, %v615
        %v646 = vstv %s606
        %v647 = vmul.f32 %v646, %v621
        %v648 = vadd.f32 %v645, %v647
        %v649 = vstv %s598
        %v650 = vmul.f32 %v649, %v576
        %v651 = vstv %s607
        %v652 = vmul.f32 %v651, %v567
        %v653 = vadd.f32 %v650, %v652
        %v654 = vadd.f32 %v648, %v653
        %v655 = vstv %s599
        %v656 = vmul.f32 %v655, %v618
        %v657 = vstv %s608
        %v658 = vmul.f32 %v657, %v624
        %v659 = vadd.f32 %v656, %v658
        %v660 = vadd.f32 %v654, %v659
        %v661 = vadd.f32 %v643, %v660
        %v662 = vstv %s600
        %v663 = vmul.f32 %v662, %v615
        %v664 = vstv %s609
        %v665 = vmul.f32 %v664, %v621
        %v666 = vadd.f32 %v663, %v665
        %v667 = vstv %s601
        %v668 = vmul.f32 %v667, %v576
        %v669 = vstv %s610
        %v670 = vmul.f32 %v669, %v567
        %v671 = vadd.f32 %v668, %v670
        %v672 = vadd.f32 %v666, %v671
        %v673 = vstv %s602
        %v674 = vmul.f32 %v673, %v618
        %v675 = vstv %s611
        %v676 = vmul.f32 %v675, %v624
        %v677 = vadd.f32 %v674, %v676
        %v678 = vadd.f32 %v672, %v677
        %v679 = vrot.slane %v678, 1
        %v680 = vmul.f32 %v679, %v593
        %v681 = vadd.f32 %v661, %v680
        %v682 = vstv %s612
        %v683 = vadd.f32 %v681, %v682
        %v684 = vtanh.pop %v683
        %685 = vst.msk [vmem:[%s369] sm:$0xff] %vm410, %v684
        %686 = vrot.lane.b32.xlu0 %v577, 1
        %v687 = vpop.permute.xlu0 %686
        %v688 = vmul.f32 %v687, %v584
        %689 = vrot.lane.b32.xlu0 %v577, 127
        %v690 = vpop.permute.xlu0 %689
        %v691 = vmul.f32 %v690, %v587
        %692 = vrot.lane.b32.xlu0 %v570, 1
        %v693 = vpop.permute.xlu0 %692
        %v694 = vmul.f32 %v693, %v584
        %695 = vrot.lane.b32.xlu0 %v570, 127
        %v696 = vpop.permute.xlu0 %695
        %v697 = vmul.f32 %v696, %v587
        %v698 = vmul.f32 %v625, %v688
        %v699 = vmul.f32 %v627, %v694
        %v700 = vadd.f32 %v698, %v699
        %v701 = vmul.f32 %v630, %v577
        %v702 = vmul.f32 %v632, %v570
        %v703 = vadd.f32 %v701, %v702
        %v704 = vadd.f32 %v700, %v703
        %v705 = vmul.f32 %v636, %v691
        %v706 = vmul.f32 %v638, %v697
        %v707 = vadd.f32 %v705, %v706
        %v708 = vadd.f32 %v704, %v707
        %v709 = vrot.slane %v708, 7
        %v710 = vmul.f32 %v709, %v590
        %v711 = vmul.f32 %v644, %v688
        %v712 = vmul.f32 %v646, %v694
        %v713 = vadd.f32 %v711, %v712
        %v714 = vmul.f32 %v649, %v577
        %v715 = vmul.f32 %v651, %v570
        %v716 = vadd.f32 %v714, %v715
        %v717 = vadd.f32 %v713, %v716
        %v718 = vmul.f32 %v655, %v691
        %v719 = vmul.f32 %v657, %v697
        %v720 = vadd.f32 %v718, %v719
        %v721 = vadd.f32 %v717, %v720
        %v722 = vadd.f32 %v710, %v721
        %v723 = vmul.f32 %v662, %v688
        %v724 = vmul.f32 %v664, %v694
        %v725 = vadd.f32 %v723, %v724
        %v726 = vmul.f32 %v667, %v577
        %v727 = vmul.f32 %v669, %v570
        %v728 = vadd.f32 %v726, %v727
        %v729 = vadd.f32 %v725, %v728
        %v730 = vmul.f32 %v673, %v691
        %v731 = vmul.f32 %v675, %v697
        %v732 = vadd.f32 %v730, %v731
        %v733 = vadd.f32 %v729, %v732
        %v734 = vrot.slane %v733, 1
        %v735 = vmul.f32 %v734, %v593
        %v736 = vadd.f32 %v722, %v735
        %v737 = vadd.f32 %v736, %v682
        %v738 = vtanh.pop %v737
        %739 = vst.msk [vmem:[%s376] sm:$0xff] %vm410, %v738
        %s740 = sand.u32 %s204, 1
        %s741 = scalar_lea.sflag [#allocation7], %s740
        %s742 = sand.u32 %s204, 1
        %s743 = smul.addr %s742, 8
        %s744 = scalar_lea.vmem [#allocation10], %s743
        %s745 = sand.u32 %s230, 1
        %s746 = scalar_lea.sflag [#allocation12], %s745
        %s747 = sand.u32 %s230, 1
        %s748 = smul.addr %s747, 8
        %s749 = scalar_lea.vmem [#allocation11], %s748
        // Predicated region
        $region57: #{tpu_custom_call.1} parent=47 // pred_check
          %p750 = pneg %p214
        $region58: #{tpu_custom_call.1} parent=47 // pred_check_branch
          %752 = sbr.rel (%p750) target = $region60
        $region59: #{tpu_custom_call.1} parent=47 // pred_region
          %754 = vsyncadd %s741, 0
          %s755 = smul.addr %s29, 8
          %s756 = scalar_lea.hbm %s7, %s755
          %s758 = sshll.u32 %s744, 4
          %s759 = int_to_ptr.vmem [resolvable:$true] %s758
          %s760 = sshll.u32 %s756, 4
          %s761 = int_to_ptr.hbm [resolvable:$true] %s760
          %763 = dma.vmem_to_hbm [thread:$0]  %s759, 128, %s761, %s741
        $region60: #{tpu_custom_call.1} parent=47 // pred_fallthru
          _
        // Predicated region
        $region61: #{tpu_custom_call.1} parent=47 // pred_check
          %p764 = pneg %p240
        $region62: #{tpu_custom_call.1} parent=47 // pred_check_branch
          %766 = sbr.rel (%p764) target = $region64
        $region63: #{tpu_custom_call.1} parent=47 // pred_region
          %768 = vsyncadd %s746, 0
          %s769 = smul.addr %s29, 8
          %s770 = scalar_lea.hbm %s8, %s769
          %s772 = sshll.u32 %s749, 4
          %s773 = int_to_ptr.vmem [resolvable:$true] %s772
          %s774 = sshll.u32 %s770, 4
          %s775 = int_to_ptr.hbm [resolvable:$true] %s774
          %777 = dma.vmem_to_hbm [thread:$0]  %s773, 128, %s775, %s746
        $region64: #{tpu_custom_call.1} parent=47 // pred_fallthru
          _
      $region48: #{tpu_custom_call.1} parent=5 // pred_fallthru
        _
      %p778 = scmp.le.s32.totalorder 2, %s24
      // Predicated region
      $region65: #{tpu_custom_call.1} parent=5 // pred_check
        %p779 = pneg %p778
      $region66: #{tpu_custom_call.1} parent=5 // pred_check_branch
        %781 = sbr.rel (%p779) target = $region68
      $region67: #{tpu_custom_call.1} parent=5 // pred_region
        %s782 = ssub.s32 %s24, 2
        // Predicated region
        $region69: #{tpu_custom_call.1} parent=67 // pred_check
          %p783 = pneg %p220
        $region70: #{tpu_custom_call.1} parent=67 // pred_check_branch
          %785 = sbr.rel (%p783) target = $region72
        $region71: #{tpu_custom_call.1} parent=67 // pred_region
          %s786 = sand.u32 %s205, 1
          %s787 = scalar_lea.sflag [#allocation7], %s786
          %s788 = sand.u32 %s205, 1
          %s789 = smul.addr %s788, 8
          %s790 = scalar_lea.vmem [#allocation10], %s789
          %792 = dma.done %s787, 128
        $region72: #{tpu_custom_call.1} parent=67 // pred_fallthru
          _
        // Predicated region
        $region73: #{tpu_custom_call.1} parent=67 // pred_check
          %p793 = pneg %p246
        $region74: #{tpu_custom_call.1} parent=67 // pred_check_branch
          %795 = sbr.rel (%p793) target = $region76
        $region75: #{tpu_custom_call.1} parent=67 // pred_region
          %s796 = sand.u32 %s231, 1
          %s797 = scalar_lea.sflag [#allocation12], %s796
          %s798 = sand.u32 %s231, 1
          %s799 = smul.addr %s798, 8
          %s800 = scalar_lea.vmem [#allocation11], %s799
          %802 = dma.done %s797, 128
        $region76: #{tpu_custom_call.1} parent=67 // pred_fallthru
          _
      $region68: #{tpu_custom_call.1} parent=5 // pred_fallthru
        _
    $region6: #{tpu_custom_call.1} parent=1 // loop_footer
      %s28 = sadd.s32 1, %s24
    $region7: #{tpu_custom_call.1} parent=1 // loop_footer_branch
      %23 = sbr.rel target = $region3
    $region8: #{tpu_custom_call.1} parent=1 // loop_exit
      _
    %803 = vsyncpa [#allocation6], 1
    %s804 = scalar_lea.sflag [#allocation6], 1
    %805 = vsyncpa %s804, 1
    %806 = vsyncpa [#allocation7], 1
    %s807 = scalar_lea.sflag [#allocation7], 1
    %808 = vsyncpa %s807, 1
    %809 = vsyncpa [#allocation12], 1
    %s810 = scalar_lea.sflag [#allocation12], 1
    %811 = vsyncpa %s810, 1
    %812 = vsyncpa [#allocation8], 1
    %s813 = scalar_lea.sflag [#allocation8], 1
    %814 = vsyncpa %s813, 1

</llo_original>
